<compile_context>
chip_gen: v6e
topology: v6e:2x2x1
jax: 0.10.0
libtpu: 0.0.40
codegen_flags: <defaults>
</compile_context>

<pallas_src>
import functools

import jax
import jax.numpy as jnp
from jax.experimental import pallas as pl
from jax.experimental.pallas import tpu as pltpu


def find_multiple(n: int, k: int) -> int:
    if n % k == 0:
        return n
    return n + k - n % k


def _round_up(n: int, k: int) -> int:
    return ((n + k - 1) // k) * k


def _pick_tile(total: int, desired: int, quantum: int = 128) -> int:
    """Largest multiple of `quantum` that divides `total` and is <= desired."""
    assert total % quantum == 0
    best = quantum
    t = quantum
    while t <= min(total, desired):
        if total % t == 0:
            best = t
        t += quantum
    return best


def _vmem_limit_bytes() -> int:
    """Generation-dependent scoped-VMEM limit (~85% of physical capacity)."""
    try:
        cap = int(pltpu.get_tpu_info().vmem_capacity_bytes)
        return int(cap * 0.85)
    except Exception:
        return 64 * 1024 * 1024  # conservative fallback


def _vmem_estimate(tm: int, ti: int, D: int, w_bytes: int, out_bytes: int) -> int:
    """Double-buffered pipelined blocks + f32 accumulator + implicit temporaries."""
    x_blk = 2 * tm * D * w_bytes
    w13_blk = 2 * D * (2 * ti) * w_bytes
    w2_blk = 2 * ti * D * w_bytes
    o_blk = 2 * tm * D * out_bytes
    acc = tm * D * 4
    tmp = 3 * tm * ti * 4  # h13 + g f32 intermediates (vreg/VMEM pressure)
    return x_blk + w13_blk + w2_blk + o_blk + acc + tmp


def _ffn_kernel(x_ref, w13_ref, w2_ref, o_ref, acc_ref, *, tile_i):
    # grid = (token/core tiles [parallel], intermediate tiles [arbitrary, last])
    j = pl.program_id(1)

    @pl.when(j == 0)
    def _():
        acc_ref[...] = jnp.zeros_like(acc_ref)

    x = x_ref[...]                                            # (tm, D) bf16
    # fused gate+up projection: one wide MXU matmul -> (tm, 2*tile_i) f32
    h13 = jnp.dot(x, w13_ref[...], preferred_element_type=jnp.float32)
    h1 = h13[:, :tile_i]
    h3 = h13[:, tile_i:]
    # SiLU(h1) * h3 in f32 (sigmoid goes to the EUP slot)
    g = (h1 * jax.nn.sigmoid(h1)) * h3
    # down projection, accumulated over intermediate tiles in f32
    acc_ref[...] += jnp.dot(
        g.astype(w2_ref.dtype), w2_ref[...], preferred_element_type=jnp.float32
    )

    @pl.when(j == pl.num_programs(1) - 1)
    def _():
        o_ref[...] = acc_ref[...].astype(o_ref.dtype)


def prepare_ffn_weights(w1, w3, w2, *, tile_i=512, dtype=jnp.bfloat16):
    """One-time weight prep (at weight-load time, NOT per forward call).

    w1, w3: [I, D]  (PyTorch nn.Linear layout)
    w2:     [D, I]
    Returns block-major weights:
      w13: [I/ti, D, 2*ti]   tile j holds [w1^T tile j | w3^T tile j] contiguously
      w2b: [I/ti, ti, D]     tile j holds rows [j*ti:(j+1)*ti] of w2^T
    tile_i is adapted to the largest multiple of 128 <= tile_i that divides I.
    """
    I, D = w1.shape
    assert w3.shape == (I, D) and w2.shape == (D, I)
    assert D % 128 == 0 and I % 128 == 0
    ti = _pick_tile(I, tile_i)
    n = I // ti
    w1_t = w1.T.astype(dtype)                                 # [D, I]
    w3_t = w3.T.astype(dtype)                                 # [D, I]
    w13 = jnp.concatenate(
        [w1_t.reshape(D, n, ti).transpose(1, 0, 2),
         w3_t.reshape(D, n, ti).transpose(1, 0, 2)],
        axis=2,
    )                                                         # [n, D, 2*ti]
    w2b = w2.T.astype(dtype).reshape(n, ti, D)                # [n, ti, D]
    return w13, w2b


@functools.partial(jax.jit, static_argnames=("tile_m",))
def feed_forward(x, w13, w2b, *, tile_m=512):
    """x: [B, S, D]; w13: [I/ti, D, 2*ti]; w2b: [I/ti, ti, D] (from prepare_ffn_weights)."""
    B, S, D = x.shape
    n_i, _, two_ti = w13.shape
    tile_i = two_ti // 2
    I = n_i * tile_i
    assert w13.shape == (n_i, D, 2 * tile_i)
    assert w2b.shape == (n_i, tile_i, D)
    assert D % 128 == 0 and tile_i % 128 == 0

    w_bytes = jnp.dtype(w13.dtype).itemsize
    out_bytes = jnp.dtype(x.dtype).itemsize
    vmem_limit = _vmem_limit_bytes()

    tokens = B * S
    tm = max(16, _round_up(min(tile_m, tokens), 16))
    # shrink the token tile until blocks + accumulator + temps fit the VMEM budget
    while tm > 128 and _vmem_estimate(tm, tile_i, D, w_bytes, out_bytes) > vmem_limit:
        tm = max(128, _round_up(tm // 2, 16))
    tokens_pad = _round_up(tokens, tm)

    x2 = x.reshape(tokens, D).astype(w13.dtype)
    if tokens_pad != tokens:
        x2 = jnp.pad(x2, ((0, tokens_pad - tokens), (0, 0)))

    n_token_tiles = tokens_pad // tm
    kernel = functools.partial(_ffn_kernel, tile_i=tile_i)
    compiler_params = pltpu.CompilerParams(
        dimension_semantics=("parallel", "arbitrary"),
        vmem_limit_bytes=vmem_limit,
    )

    decode = (n_token_tiles == 1) and (n_i % 2 == 0)

    if decode:
        # Decode / single-token-tile path: split the weight sweep across a
        # leading parallel axis (2 programs) so both v7x TensorCores stream
        # half the weights; sum the two f32 partials in a trivial epilogue.
        n_split = 2
        jpc = n_i // n_split
        cost = pl.CostEstimate(
            flops=6 * tokens_pad * D * I,
            transcendentals=tokens_pad * I,
            bytes_accessed=(w13.size + w2b.size) * w_bytes
            + x2.size * w_bytes
            + n_split * tokens_pad * D * 4,
        )
        partial_out = pl.pallas_call(
            kernel,
            out_shape=jax.ShapeDtypeStruct((n_split, tokens_pad, D), jnp.float32),
            grid_spec=pltpu.PrefetchScalarGridSpec(
                num_scalar_prefetch=0,
                grid=(n_split, jpc),
                in_specs=[
                    pl.BlockSpec((tm, D), lambda c, j: (0, 0)),            # x (shared)
                    pl.BlockSpec((None, D, 2 * tile_i),
                                 lambda c, j: (c * jpc + j, 0, 0)),        # w13 block
                    pl.BlockSpec((None, tile_i, D),
                                 lambda c, j: (c * jpc + j, 0, 0)),        # w2 block
                ],
                out_specs=pl.BlockSpec((None, tm, D), lambda c, j: (c, 0, 0)),
                scratch_shapes=[pltpu.VMEM((tm, D), jnp.float32)],
            ),
            compiler_params=compiler_params,
            cost_estimate=cost,
        )(x2, w13, w2b)
        out = partial_out.sum(axis=0).astype(x.dtype)
    else:
        cost = pl.CostEstimate(
            flops=6 * tokens_pad * D * I,
            transcendentals=tokens_pad * I,
            # weights are re-streamed once per token tile
            bytes_accessed=n_token_tiles * (w13.size + w2b.size) * w_bytes
            + x2.size * w_bytes
            + tokens_pad * D * out_bytes,
        )
        out = pl.pallas_call(
            kernel,
            out_shape=jax.ShapeDtypeStruct((tokens_pad, D), x.dtype),
            grid_spec=pltpu.PrefetchScalarGridSpec(
                num_scalar_prefetch=0,
                grid=(n_token_tiles, n_i),
                in_specs=[
                    pl.BlockSpec((tm, D), lambda i, j: (i, 0)),            # x tile
                    pl.BlockSpec((None, D, 2 * tile_i),
                                 lambda i, j: (j, 0, 0)),                  # w13 block
                    pl.BlockSpec((None, tile_i, D),
                                 lambda i, j: (j, 0, 0)),                  # w2 block
                ],
                out_specs=pl.BlockSpec((tm, D), lambda i, j: (i, 0)),
                scratch_shapes=[pltpu.VMEM((tm, D), jnp.float32)],
            ),
            compiler_params=compiler_params,
            cost_estimate=cost,
        )(x2, w13, w2b)

    if tokens_pad != tokens:
        out = out[:tokens]
    return out.reshape(B, S, D)


def _reference(x, w1, w3, w2):
    """Pure-JAX reference using bf16-cast params to match kernel compute dtype."""
    xb = x.astype(jnp.bfloat16).astype(jnp.float32)
    w1b = w1.astype(jnp.bfloat16).astype(jnp.float32)
    w3b = w3.astype(jnp.bfloat16).astype(jnp.float32)
    w2b = w2.astype(jnp.bfloat16).astype(jnp.float32)
    return (jax.nn.silu(xb @ w1b.T) * (xb @ w3b.T)) @ w2b.T


if __name__ == "__main__":
    # Small shapes consistent with the module: dim -> intermediate -> dim,
    # intermediate_size derived like ModelArgs.__post_init__.
    B, S, D = 2, 8, 256
    I = find_multiple(int(2 * (4 * D) / 3), 256)  # 768

    key = jax.random.PRNGKey(0)
    kx, k1, k2, k3, kx2 = jax.random.split(key, 5)

    x = jax.random.normal(kx, (B, S, D), dtype=jnp.float32)
    # nn.Linear(dim, intermediate, bias=False).weight -> [intermediate, dim]
    w1 = jax.random.normal(k1, (I, D), dtype=jnp.float32) * 0.02
    w3 = jax.random.normal(k3, (I, D), dtype=jnp.float32) * 0.02
    # nn.Linear(intermediate, dim, bias=False).weight -> [dim, intermediate]
    w2 = jax.random.normal(k2, (D, I), dtype=jnp.float32) * 0.02

    w13, w2b = prepare_ffn_weights(w1, w3, w2, tile_i=512)  # tile_i adapts to 384 here

    # 1) Decode-sized call: single token tile -> intermediate axis split across cores.
    out = jax.block_until_ready(feed_forward(x, w13, w2b))
    ref = _reference(x, w1, w3, w2)
    assert out.shape == (B, S, D) and out.dtype == x.dtype
    err = float(jnp.max(jnp.abs(out - ref)))
    assert jnp.allclose(out, ref, atol=5e-3, rtol=5e-2), f"decode-path mismatch: {err}"

    # 2) Prefill-sized call: multiple token tiles -> weight streaming per token tile.
    S2 = 64
    xp = jax.random.normal(kx2, (B, S2, D), dtype=jnp.float32)
    out_p = jax.block_until_ready(feed_forward(xp, w13, w2b, tile_m=64))
    ref_p = _reference(xp, w1, w3, w2)
    assert out_p.shape == (B, S2, D) and out_p.dtype == xp.dtype
    err_p = float(jnp.max(jnp.abs(out_p - ref_p)))
    assert jnp.allclose(out_p, ref_p, atol=5e-3, rtol=5e-2), f"prefill-path mismatch: {err_p}"

    print("KERNEL_OK")
</pallas_src>

<mosaic_0001>
module attributes {stable_mosaic.version = 11 : i64} {
  func.func @_ffn_kernel(%arg0: i32, %arg1: i32, %arg2: memref<16x256xbf16, #tpu.memory_space<vmem>>, %arg3: memref<1x256x768xbf16, #tpu.memory_space<vmem>>, %arg4: memref<1x384x256xbf16, #tpu.memory_space<vmem>>, %arg5: memref<1x16x256xf32, #tpu.memory_space<vmem>>, %arg6: memref<16x256xf32, #tpu.memory_space<vmem>>) attributes {dimension_semantics = [#tpu.dimension_semantics<parallel>, #tpu.dimension_semantics<arbitrary>], iteration_bounds = array<i64: 2, 1>, scalar_prefetch = 0 : i64, scratch_operands = 1 : i64, tpu.core_type = #tpu.core_type<tc>, window_params = [{pipeline_mode = #tpu.pipeline_mode<synchronous>, transform_indices = @transform_0, window_bounds = array<i64: 16, 256>}, {transform_indices = @transform_1, window_bounds = array<i64: 1, 256, 768>}, {transform_indices = @transform_2, window_bounds = array<i64: 1, 384, 256>}, {transform_indices = @transform_3, window_bounds = array<i64: 1, 16, 256>}]} {
    %c0_i32 = arith.constant 0 : i32
    %0 = arith.cmpi eq, %arg1, %c0_i32 : i32
    %1 = arith.extui %0 : i1 to i32
    %c0_i32_0 = arith.constant 0 : i32
    %2 = arith.cmpi ne, %1, %c0_i32_0 : i32
    scf.if %2 {
      %cst_16 = arith.constant 0.000000e+00 : f32
      %26 = vector.broadcast %cst_16 : f32 to vector<16x256xf32>
      %c0_17 = arith.constant 0 : index
      %c0_18 = arith.constant 0 : index
      %27 = vector.load %arg6[%c0_17, %c0_18] : memref<16x256xf32, #tpu.memory_space<vmem>>, vector<16x256xf32>
      tpu.vector_store %arg6[%c0_17, %c0_18], %26 {strides = array<i32>} : memref<16x256xf32, #tpu.memory_space<vmem>>, vector<16x256xf32>,
    } else {
    }
    %c0 = arith.constant 0 : index
    %c0_1 = arith.constant 0 : index
    %3 = vector.load %arg2[%c0, %c0_1] : memref<16x256xbf16, #tpu.memory_space<vmem>>, vector<16x256xbf16>
    %c0_2 = arith.constant 0 : index
    %c0_3 = arith.constant 0 : index
    %c0_4 = arith.constant 0 : index
    %4 = vector.load %arg3[%c0_2, %c0_3, %c0_4] : memref<1x256x768xbf16, #tpu.memory_space<vmem>>, vector<1x256x768xbf16>
    %5 = vector.shape_cast %4 : vector<1x256x768xbf16> to vector<256x768xbf16>
    %cst = arith.constant dense<0.000000e+00> : vector<16x768xf32>
    %6 = tpu.matmul %3, %5, %cst {dimension_numbers = #tpu.dot_dimension_numbers<[1], [0], [0], [1], [0, 0, 1, 1], [], []>} : vector<16x256xbf16>, vector<256x768xbf16>, vector<16x768xf32> -> vector<16x768xf32>
    %7 = vector.extract_strided_slice %6 {offsets = [0, 0], sizes = [16, 384], strides = [1, 1]} : vector<16x768xf32> to vector<16x384xf32>
    %8 = vector.extract_strided_slice %6 {offsets = [0, 384], sizes = [16, 384], strides = [1, 1]} : vector<16x768xf32> to vector<16x384xf32>
    %9 = arith.negf %7 : vector<16x384xf32>
    %10 = math.exp %9 : vector<16x384xf32>
    %cst_5 = arith.constant 1.000000e+00 : f32
    %11 = vector.broadcast %cst_5 : f32 to vector<16x384xf32>
    %12 = arith.addf %11, %10 : vector<16x384xf32>
    %13 = arith.divf %11, %12 : vector<16x384xf32>
    %14 = arith.mulf %7, %13 : vector<16x384xf32>
    %15 = arith.mulf %14, %8 : vector<16x384xf32>
    %c0_6 = arith.constant 0 : index
    %c0_7 = arith.constant 0 : index
    %16 = vector.load %arg6[%c0_6, %c0_7] : memref<16x256xf32, #tpu.memory_space<vmem>>, vector<16x256xf32>
    %17 = arith.truncf %15 : vector<16x384xf32> to vector<16x384xbf16>
    %c0_8 = arith.constant 0 : index
    %c0_9 = arith.constant 0 : index
    %c0_10 = arith.constant 0 : index
    %18 = vector.load %arg4[%c0_8, %c0_9, %c0_10] : memref<1x384x256xbf16, #tpu.memory_space<vmem>>, vector<1x384x256xbf16>
    %19 = vector.shape_cast %18 : vector<1x384x256xbf16> to vector<384x256xbf16>
    %cst_11 = arith.constant dense<0.000000e+00> : vector<16x256xf32>
    %20 = tpu.matmul %17, %19, %cst_11 {dimension_numbers = #tpu.dot_dimension_numbers<[1], [0], [0], [1], [0, 0, 1, 1], [], []>} : vector<16x384xbf16>, vector<384x256xbf16>, vector<16x256xf32> -> vector<16x256xf32>
    %21 = arith.addf %16, %20 : vector<16x256xf32>
    %c0_12 = arith.constant 0 : index
    %c0_13 = arith.constant 0 : index
    %22 = vector.load %arg6[%c0_12, %c0_13] : memref<16x256xf32, #tpu.memory_space<vmem>>, vector<16x256xf32>
    tpu.vector_store %arg6[%c0_12, %c0_13], %21 {strides = array<i32>} : memref<16x256xf32, #tpu.memory_space<vmem>>, vector<16x256xf32>,
    %c0_i32_14 = arith.constant 0 : i32
    %23 = arith.cmpi eq, %arg1, %c0_i32_14 : i32
    %24 = arith.extui %23 : i1 to i32
    %c0_i32_15 = arith.constant 0 : i32
    %25 = arith.cmpi ne, %24, %c0_i32_15 : i32
    scf.if %25 {
      %c0_16 = arith.constant 0 : index
      %c0_17 = arith.constant 0 : index
      %26 = vector.load %arg6[%c0_16, %c0_17] : memref<16x256xf32, #tpu.memory_space<vmem>>, vector<16x256xf32>
      %c0_18 = arith.constant 0 : index
      %c0_19 = arith.constant 0 : index
      %c0_20 = arith.constant 0 : index
      %27 = vector.load %arg5[%c0_18, %c0_19, %c0_20] : memref<1x16x256xf32, #tpu.memory_space<vmem>>, vector<1x16x256xf32>
      %28 = vector.shape_cast %27 : vector<1x16x256xf32> to vector<16x256xf32>
      %29 = vector.shape_cast %26 : vector<16x256xf32> to vector<1x16x256xf32>
      tpu.vector_store %arg5[%c0_18, %c0_19, %c0_20], %29 {strides = array<i32>} : memref<1x16x256xf32, #tpu.memory_space<vmem>>, vector<1x16x256xf32>,
    } else {
    }
    return
  }
  func.func @transform_0(%arg0: i32, %arg1: i32) -> (i32, i32) {
    %c0_i32 = arith.constant 0 : i32
    %c0_i32_0 = arith.constant 0 : i32
    %c0_i32_1 = arith.constant 0 : i32
    return %c0_i32, %c0_i32_0 : i32, i32
  }
  func.func @transform_1(%arg0: i32, %arg1: i32) -> (i32, i32, i32) {
    %c1_i32 = arith.constant 1 : i32
    %0 = arith.muli %arg0, %c1_i32 : i32
    %1 = arith.addi %0, %arg1 : i32
    %c0_i32 = arith.constant 0 : i32
    %c0_i32_0 = arith.constant 0 : i32
    %c0_i32_1 = arith.constant 0 : i32
    return %1, %c0_i32, %c0_i32_0 : i32, i32, i32
  }
  func.func @transform_2(%arg0: i32, %arg1: i32) -> (i32, i32, i32) {
    %c1_i32 = arith.constant 1 : i32
    %0 = arith.muli %arg0, %c1_i32 : i32
    %1 = arith.addi %0, %arg1 : i32
    %c0_i32 = arith.constant 0 : i32
    %c0_i32_0 = arith.constant 0 : i32
    %c0_i32_1 = arith.constant 0 : i32
    return %1, %c0_i32, %c0_i32_0 : i32, i32, i32
  }
  func.func @transform_3(%arg0: i32, %arg1: i32) -> (i32, i32, i32) {
    %c0_i32 = arith.constant 0 : i32
    %c0_i32_0 = arith.constant 0 : i32
    %c0_i32_1 = arith.constant 0 : i32
    return %arg0, %c0_i32, %c0_i32_0 : i32, i32, i32
  }
}

</mosaic_0001>

<llo_original>
// kernel: feed_forward.1
$region0: #{feed_forward.1}
  #allocation0 [shape = 'u32[]', space=smem, size = 0x4, offset = 0x4, fixed_abs, tag = 'smem constant byte address 0x4 - core index']
  #allocation1 [shape = 'u32[144,128]{1,0:T(1,128)}', space=vmem, size = 0x12000, scoped, tag = 'internal scratch']
  #allocation2 [shape = 'f32[16,256]{1,0:T(8,128)}', space=vmem, size = 0x4000, scoped, tag = 'scratch operand']
  %s0 = inlined_call_operand.vmem [shape: bf16[16,256], index: 0, kind: input, shape index: {}]
  %s1 = inlined_call_operand.hbm [shape: bf16[2,256,768], index: 1, kind: input, shape index: {}]
  %s2 = inlined_call_operand.hbm [shape: bf16[2,384,256], index: 2, kind: input, shape index: {}]
  %s3 = inlined_call_operand.vmem [shape: f32[2,16,256], index: 3, kind: output, shape index: {}]
  %s4 = sld [smem:[#allocation0]]
  $region61: #{feed_forward.1} parent=0
    _
  %s6 = ssub.s32 1, %s4
  %s7 = scalar_select 0, %s6, %s4
  $region1: #{feed_forward.1} parent=0
    #allocation3 [shape = 'u8[786432]{0}', space=vmem, size = 0xc0000, scoped, tag = 'input window, operand 1']
    #allocation4 [shape = 's32[2]{0}', space=sflag, size = 0x8, scoped, tag = 'scoped memory for feed_forward.1']
    #allocation5 [shape = 'u8[393216]{0}', space=vmem, size = 0x60000, scoped, tag = 'input window, operand 2']
    #allocation6 [shape = 's32[2]{0}', space=sflag, size = 0x8, scoped, tag = 'scoped memory for feed_forward.1']
    %8 = vsyncpa [#allocation4], 0
    %s9 = scalar_lea.sflag [#allocation4], 1
    %10 = vsyncpa %s9, 0
    %11 = vsyncpa [#allocation6], 0
    %s12 = scalar_lea.sflag [#allocation6], 1
    %13 = vsyncpa %s12, 0
    loop: start=0, step=1, limit=4
    $region2: #{feed_forward.1} parent=1 // loop_pre_header
      _
    $region3: #{feed_forward.1} parent=1 // loop_header
      %s15 = sphi 0, %s19
      %p16 = scmp.ge.s32.totalorder %s15, 4
      %s22 = sphi 0, %s34
      %s23 = sphi 0, %s30
      %s24 = sphi 0, %s22
      %s25 = sphi 0, %s23
      %s26 = sphi 0, %s24
      %s27 = sphi 0, %s25
      %s35 = sphi 0, %s35
      %s37 = sphi 0, %s35
      %s38 = sphi 0, %s37
      %s52 = sphi 0, %s38
      %s60 = sphi 0, %s62
      %s63 = sphi 0, %s60
      %s64 = sphi 0, %s63
      %s80 = sphi 0, %s64
      %s88 = sphi 0, %s90
      %s91 = sphi 0, %s88
      %s92 = sphi 0, %s91
      %s108 = sphi 0, %s92
      %s114 = sphi 0, %s116
      %s117 = sphi 0, %s114
      %s118 = sphi 0, %s117
      %s134 = sphi 0, %s118
    $region4: #{feed_forward.1} parent=1 // loop_header_branch
      %18 = sbr.rel (%p16) target = $region8
    $region5: #{feed_forward.1} parent=1 // loop_body
      %s20 = ssub.s32 %s15, 1
      %s21 = ssub.s32 %s15, 2
      %s28 = sadd.s32 1, %s23
      %p29 = scmp.ge.s32.totalorder %s28, 1
      %s30 = scalar_select %p29, 0, %s28
      %s31 = sadd.s32 1, %s22
      %s32 = scalar_select %p29, %s31, %s22
      %p33 = scmp.ge.s32.totalorder %s32, 2
      %s34 = scalar_select %p33, 0, %s32
      %s36 = sadd.s32 %s35, 1
      %p39 = scmp.eq.s32.totalorder %s15, 1
      %p40 = scmp.ne.s32.totalorder %s35, %s37
      %p41 = scmp.eq.s32.totalorder %s15, 0
      %p42 = por %p40, %p41
      %p43 = scmp.ne.s32.totalorder %s35, %s37
      %p44 = scmp.eq.s32.totalorder %s20, 1
      %p45 = por %p43, %p44
      %p46 = scmp.ne.s32.totalorder %s37, %s38
      %p47 = scmp.eq.s32.totalorder %s20, 0
      %p48 = por %p46, %p47
      %p49 = scmp.ne.s32.totalorder %s37, %s38
      %p50 = scmp.eq.s32.totalorder %s21, 1
      %p51 = por %p49, %p50
      %p53 = scmp.ne.s32.totalorder %s38, %s52
      %p54 = scmp.eq.s32.totalorder %s21, 0
      %p55 = por %p53, %p54
      %s56 = sadd.s32 %s22, %s23
      %s57 = sadd.s32 %s34, %s30
      %s58 = ssub.s32 %s56, %s57
      %p59 = scmp.eq.s32.totalorder %s58, 0
      %s61 = sadd.s32 %s60, 1
      %s62 = scalar_select %p59, %s60, %s61
      %p65 = pneg %p59
      %p66 = scmp.eq.s32.totalorder %s15, 1
      %p67 = por %p65, %p66
      %p68 = scmp.ne.s32.totalorder %s60, %s63
      %p69 = scmp.eq.s32.totalorder %s15, 0
      %p70 = por %p68, %p69
      %p71 = scmp.ne.s32.totalorder %s60, %s63
      %p72 = scmp.eq.s32.totalorder %s20, 1
      %p73 = por %p71, %p72
      %p74 = scmp.ne.s32.totalorder %s63, %s64
      %p75 = scmp.eq.s32.totalorder %s20, 0
      %p76 = por %p74, %p75
      %p77 = scmp.ne.s32.totalorder %s63, %s64
      %p78 = scmp.eq.s32.totalorder %s21, 1
      %p79 = por %p77, %p78
      %p81 = scmp.ne.s32.totalorder %s64, %s80
      %p82 = scmp.eq.s32.totalorder %s21, 0
      %p83 = por %p81, %p82
      %s84 = sadd.s32 %s22, %s23
      %s85 = sadd.s32 %s34, %s30
      %s86 = ssub.s32 %s84, %s85
      %p87 = scmp.eq.s32.totalorder %s86, 0
      %s89 = sadd.s32 %s88, 1
      %s90 = scalar_select %p87, %s88, %s89
      %p93 = pneg %p87
      %p94 = scmp.eq.s32.totalorder %s15, 1
      %p95 = por %p93, %p94
      %p96 = scmp.ne.s32.totalorder %s88, %s91
      %p97 = scmp.eq.s32.totalorder %s15, 0
      %p98 = por %p96, %p97
      %p99 = scmp.ne.s32.totalorder %s88, %s91
      %p100 = scmp.eq.s32.totalorder %s20, 1
      %p101 = por %p99, %p100
      %p102 = scmp.ne.s32.totalorder %s91, %s92
      %p103 = scmp.eq.s32.totalorder %s20, 0
      %p104 = por %p102, %p103
      %p105 = scmp.ne.s32.totalorder %s91, %s92
      %p106 = scmp.eq.s32.totalorder %s21, 1
      %p107 = por %p105, %p106
      %p109 = scmp.ne.s32.totalorder %s92, %s108
      %p110 = scmp.eq.s32.totalorder %s21, 0
      %p111 = por %p109, %p110
      %s112 = ssub.s32 %s22, %s34
      %p113 = scmp.eq.s32.totalorder %s112, 0
      %s115 = sadd.s32 %s114, 1
      %s116 = scalar_select %p113, %s114, %s115
      %p119 = pneg %p113
      %p120 = scmp.eq.s32.totalorder %s15, 1
      %p121 = por %p119, %p120
      %p122 = scmp.ne.s32.totalorder %s114, %s117
      %p123 = scmp.eq.s32.totalorder %s15, 0
      %p124 = por %p122, %p123
      %p125 = scmp.ne.s32.totalorder %s114, %s117
      %p126 = scmp.eq.s32.totalorder %s20, 1
      %p127 = por %p125, %p126
      %p128 = scmp.ne.s32.totalorder %s117, %s118
      %p129 = scmp.eq.s32.totalorder %s20, 0
      %p130 = por %p128, %p129
      %p131 = scmp.ne.s32.totalorder %s117, %s118
      %p132 = scmp.eq.s32.totalorder %s21, 1
      %p133 = por %p131, %p132
      %p135 = scmp.ne.s32.totalorder %s118, %s134
      %p136 = scmp.eq.s32.totalorder %s21, 0
      %p137 = por %p135, %p136
      %p138 = scmp.le.s32.totalorder 1, %s15
      %p139 = scmp.lt.s32.totalorder %s15, 3
      %p140 = pnand %p138, %p139
      %p141 = pneg %p140
      // Predicated region
      $region9: #{feed_forward.1} parent=5 // pred_check
        _
      $region10: #{feed_forward.1} parent=5 // pred_check_branch
        %143 = sbr.rel (%p140) target = $region12
      $region11: #{feed_forward.1} parent=5 // pred_region
        %s144 = ssub.s32 %s15, 1
        // Predicated region
        $region13: #{feed_forward.1} parent=11 // pred_check
          %p145 = pneg %p48
        $region14: #{feed_forward.1} parent=11 // pred_check_branch
          %147 = sbr.rel (%p145) target = $region16
        $region15: #{feed_forward.1} parent=11 // pred_region
          _
        $region16: #{feed_forward.1} parent=11 // pred_fallthru
          _
      $region12: #{feed_forward.1} parent=5 // pred_fallthru
        _
      %p148 = scmp.lt.s32.totalorder %s15, 2
      // Predicated region
      $region17: #{feed_forward.1} parent=5 // pred_check
        %p149 = pneg %p148
      $region18: #{feed_forward.1} parent=5 // pred_check_branch
        %151 = sbr.rel (%p149) target = $region20
      $region19: #{feed_forward.1} parent=5 // pred_region
        // Predicated region
        $region21: #{feed_forward.1} parent=19 // pred_check
          %p152 = pneg %p70
        $region22: #{feed_forward.1} parent=19 // pred_check_branch
          %154 = sbr.rel (%p152) target = $region24
        $region23: #{feed_forward.1} parent=19 // pred_region
          %s155 = sand.u32 %s60, 1
          %s156 = scalar_lea.sflag [#allocation4], %s155
          %s157 = sand.u32 %s60, 1
          %s158 = smul.addr %s157, 768
          %s159 = scalar_lea.vmem [#allocation3], %s158
          %s160 = sadd.s32 %s22, %s23
          %s162 = ssub.s32 12288, 12288
          %163 = vsyncadd %s156, %s162
          %s164 = smul.addr %s160, 192
          %s165 = smul.addr %s164, 64
          %s166 = scalar_lea.hbm %s1, %s165
          %s167 = sshll.u32 %s159, 4
          %s168 = int_to_ptr.vmem [resolvable:$true] %s167
          %173 = dma.hbm_to_vmem [thread:$0]  %s166, 12288, %s168, %s156, 384, 384, 24
        $region24: #{feed_forward.1} parent=19 // pred_fallthru
          _
        // Predicated region
        $region25: #{feed_forward.1} parent=19 // pred_check
          %p174 = pneg %p98
        $region26: #{feed_forward.1} parent=19 // pred_check_branch
          %176 = sbr.rel (%p174) target = $region28
        $region27: #{feed_forward.1} parent=19 // pred_region
          %s177 = sand.u32 %s88, 1
          %s178 = scalar_lea.sflag [#allocation6], %s177
          %s179 = sand.u32 %s88, 1
          %s180 = smul.addr %s179, 384
          %s181 = scalar_lea.vmem [#allocation5], %s180
          %s182 = sadd.s32 %s22, %s23
          %s184 = ssub.s32 6144, 6144
          %185 = vsyncadd %s178, %s184
          %s186 = smul.addr %s182, 96
          %s187 = smul.addr %s186, 64
          %s188 = scalar_lea.hbm %s2, %s187
          %s189 = sshll.u32 %s181, 4
          %s190 = int_to_ptr.vmem [resolvable:$true] %s189
          %195 = dma.hbm_to_vmem [thread:$0]  %s188, 6144, %s190, %s178, 128, 128, 8
        $region28: #{feed_forward.1} parent=19 // pred_fallthru
          _
      $region20: #{feed_forward.1} parent=5 // pred_fallthru
        _
      %p196 = scmp.le.s32.totalorder 1, %s15
      %p197 = scmp.lt.s32.totalorder %s15, 3
      %p198 = pnand %p196, %p197
      %p199 = pneg %p198
      // Predicated region
      $region29: #{feed_forward.1} parent=5 // pred_check
        _
      $region30: #{feed_forward.1} parent=5 // pred_check_branch
        %201 = sbr.rel (%p198) target = $region32
      $region31: #{feed_forward.1} parent=5 // pred_region
        %s202 = ssub.s32 %s15, 1
        %s203 = sand.u32 %s63, 1
        %s204 = scalar_lea.sflag [#allocation4], %s203
        %s205 = sand.u32 %s63, 1
        %s206 = smul.addr %s205, 768
        %s207 = scalar_lea.vmem [#allocation3], %s206
        // Predicated region
        $region33: #{feed_forward.1} parent=31 // pred_check
          %p208 = pneg %p76
        $region34: #{feed_forward.1} parent=31 // pred_check_branch
          %210 = sbr.rel (%p208) target = $region36
        $region35: #{feed_forward.1} parent=31 // pred_region
          %211 = dma.done %s204, 12288
        $region36: #{feed_forward.1} parent=31 // pred_fallthru
          _
        %s212 = sand.u32 %s91, 1
        %s213 = scalar_lea.sflag [#allocation6], %s212
        %s214 = sand.u32 %s91, 1
        %s215 = smul.addr %s214, 384
        %s216 = scalar_lea.vmem [#allocation5], %s215
        // Predicated region
        $region37: #{feed_forward.1} parent=31 // pred_check
          %p217 = pneg %p104
        $region38: #{feed_forward.1} parent=31 // pred_check_branch
          %219 = sbr.rel (%p217) target = $region40
        $region39: #{feed_forward.1} parent=31 // pred_region
          %220 = dma.done %s213, 6144
        $region40: #{feed_forward.1} parent=31 // pred_fallthru
          _
        %p221 = pneg %p48
        %p222 = pneg %p45
        %s223 = sand.u32 %s63, 1
        %s224 = scalar_lea.sflag [#allocation4], %s223
        %s225 = sand.u32 %s63, 1
        %s226 = smul.addr %s225, 768
        %s227 = scalar_lea.vmem [#allocation3], %s226
        %p228 = pneg %p76
        %p229 = pneg %p73
        %s230 = sand.u32 %s91, 1
        %s231 = scalar_lea.sflag [#allocation6], %s230
        %s232 = sand.u32 %s91, 1
        %s233 = smul.addr %s232, 384
        %s234 = scalar_lea.vmem [#allocation5], %s233
        %p235 = pneg %p104
        %p236 = pneg %p101
        %p237 = pneg %p130
        %p238 = pneg %p127
        %p239 = scmp.lt.s32.totalorder %s24, 1
        %s240 = scalar_select %p239, %s24, 1
        %s241 = smul.addr %s240, 4
        %s242 = smul.addr %s241, 8
        %s243 = scalar_lea.vmem %s3, %s242
        %s244 = sadd.s32 %s24, %s25
        %s245 = sadd.s32 %s24, %s25
        %p246 = scmp.lt.s32.totalorder %s24, 1
        %s247 = scalar_select %p246, %s24, 1
        %s248 = smul.addr %s247, 4
        %s249 = smul.addr %s248, 8
        %s250 = scalar_lea.vmem %s3, %s249
        %p252 = scmp.eq.s32.totalorder %s25, 0
        // Predicated region
        $region41: #{feed_forward.1} parent=31 // pred_check
          %p253 = pneg %p252
        $region42: #{feed_forward.1} parent=31 // pred_check_branch
          %255 = sbr.rel (%p253) target = $region44
        $region43: #{feed_forward.1} parent=31 // pred_region
          %256 = vst [vmem:[#allocation2] sm:$0xff] 0.0
          %257 = vst [vmem:[#allocation2 + $0x8] sm:$0xff] 0.0
          %258 = vst [vmem:[#allocation2 + $0x10] sm:$0xff] 0.0
          %259 = vst [vmem:[#allocation2 + $0x18] sm:$0xff] 0.0
        $region44: #{feed_forward.1} parent=31 // pred_fallthru
          _
        %v260 = vld [vmem:[%s0] sm:$0xff]
        %v261 = vld [vmem:[%s0 + $0x8] sm:$0xff]
        %v262 = vld [vmem:[%s207] sm:$0xff]
        %v263 = vld [vmem:[%s207 + $0x8] sm:$0xff]
        %v264 = vld [vmem:[%s207 + $0x10] sm:$0xff]
        %v265 = vld [vmem:[%s207 + $0x18] sm:$0xff]
        %v266 = vld [vmem:[%s207 + $0x20] sm:$0xff]
        %v267 = vld [vmem:[%s207 + $0x28] sm:$0xff]
        %v268 = vld [vmem:[%s207 + $0x30] sm:$0xff]
        %v269 = vld [vmem:[%s207 + $0x38] sm:$0xff]
        %v270 = vld [vmem:[%s207 + $0x40] sm:$0xff]
        %v271 = vld [vmem:[%s207 + $0x48] sm:$0xff]
        %v272 = vld [vmem:[%s207 + $0x50] sm:$0xff]
        %v273 = vld [vmem:[%s207 + $0x58] sm:$0xff]
        %v274 = vld [vmem:[%s207 + $0x60] sm:$0xff]
        %v275 = vld [vmem:[%s207 + $0x68] sm:$0xff]
        %v276 = vld [vmem:[%s207 + $0x70] sm:$0xff]
        %v277 = vld [vmem:[%s207 + $0x78] sm:$0xff]
        %v278 = vld [vmem:[%s207 + $0x80] sm:$0xff]
        %v279 = vld [vmem:[%s207 + $0x88] sm:$0xff]
        %v280 = vld [vmem:[%s207 + $0x90] sm:$0xff]
        %v281 = vld [vmem:[%s207 + $0x98] sm:$0xff]
        %v282 = vld [vmem:[%s207 + $0xa0] sm:$0xff]
        %v283 = vld [vmem:[%s207 + $0xa8] sm:$0xff]
        %v284 = vld [vmem:[%s207 + $0xb0] sm:$0xff]
        %v285 = vld [vmem:[%s207 + $0xb8] sm:$0xff]
        %v286 = vld [vmem:[%s207 + $0xc0] sm:$0xff]
        %v287 = vld [vmem:[%s207 + $0xc8] sm:$0xff]
        %v288 = vld [vmem:[%s207 + $0xd0] sm:$0xff]
        %v289 = vld [vmem:[%s207 + $0xd8] sm:$0xff]
        %v290 = vld [vmem:[%s207 + $0xe0] sm:$0xff]
        %v291 = vld [vmem:[%s207 + $0xe8] sm:$0xff]
        %v292 = vld [vmem:[%s207 + $0xf0] sm:$0xff]
        %v293 = vld [vmem:[%s207 + $0xf8] sm:$0xff]
        %v294 = vld [vmem:[%s207 + $0x100] sm:$0xff]
        %v295 = vld [vmem:[%s207 + $0x108] sm:$0xff]
        %v296 = vld [vmem:[%s207 + $0x110] sm:$0xff]
        %v297 = vld [vmem:[%s207 + $0x118] sm:$0xff]
        %v298 = vld [vmem:[%s207 + $0x120] sm:$0xff]
        %v299 = vld [vmem:[%s207 + $0x128] sm:$0xff]
        %v300 = vld [vmem:[%s207 + $0x130] sm:$0xff]
        %v301 = vld [vmem:[%s207 + $0x138] sm:$0xff]
        %v302 = vld [vmem:[%s207 + $0x140] sm:$0xff]
        %v303 = vld [vmem:[%s207 + $0x148] sm:$0xff]
        %v304 = vld [vmem:[%s207 + $0x150] sm:$0xff]
        %v305 = vld [vmem:[%s207 + $0x158] sm:$0xff]
        %v306 = vld [vmem:[%s207 + $0x160] sm:$0xff]
        %v307 = vld [vmem:[%s207 + $0x168] sm:$0xff]
        %v308 = vld [vmem:[%s207 + $0x170] sm:$0xff]
        %v309 = vld [vmem:[%s207 + $0x178] sm:$0xff]
        %v310 = vld [vmem:[%s207 + $0x180] sm:$0xff]
        %v311 = vld [vmem:[%s207 + $0x188] sm:$0xff]
        %v312 = vld [vmem:[%s207 + $0x190] sm:$0xff]
        %v313 = vld [vmem:[%s207 + $0x198] sm:$0xff]
        %v314 = vld [vmem:[%s207 + $0x1a0] sm:$0xff]
        %v315 = vld [vmem:[%s207 + $0x1a8] sm:$0xff]
        %v316 = vld [vmem:[%s207 + $0x1b0] sm:$0xff]
        %v317 = vld [vmem:[%s207 + $0x1b8] sm:$0xff]
        %v318 = vld [vmem:[%s207 + $0x1c0] sm:$0xff]
        %v319 = vld [vmem:[%s207 + $0x1c8] sm:$0xff]
        %v320 = vld [vmem:[%s207 + $0x1d0] sm:$0xff]
        %v321 = vld [vmem:[%s207 + $0x1d8] sm:$0xff]
        %v322 = vld [vmem:[%s207 + $0x1e0] sm:$0xff]
        %v323 = vld [vmem:[%s207 + $0x1e8] sm:$0xff]
        %v324 = vld [vmem:[%s207 + $0x1f0] sm:$0xff]
        %v325 = vld [vmem:[%s207 + $0x1f8] sm:$0xff]
        %v326 = vld [vmem:[%s207 + $0x200] sm:$0xff]
        %v327 = vld [vmem:[%s207 + $0x208] sm:$0xff]
        %v328 = vld [vmem:[%s207 + $0x210] sm:$0xff]
        %v329 = vld [vmem:[%s207 + $0x218] sm:$0xff]
        %v330 = vld [vmem:[%s207 + $0x220] sm:$0xff]
        %v331 = vld [vmem:[%s207 + $0x228] sm:$0xff]
        %v332 = vld [vmem:[%s207 + $0x230] sm:$0xff]
        %v333 = vld [vmem:[%s207 + $0x238] sm:$0xff]
        %v334 = vld [vmem:[%s207 + $0x240] sm:$0xff]
        %v335 = vld [vmem:[%s207 + $0x248] sm:$0xff]
        %v336 = vld [vmem:[%s207 + $0x250] sm:$0xff]
        %v337 = vld [vmem:[%s207 + $0x258] sm:$0xff]
        %v338 = vld [vmem:[%s207 + $0x260] sm:$0xff]
        %v339 = vld [vmem:[%s207 + $0x268] sm:$0xff]
        %v340 = vld [vmem:[%s207 + $0x270] sm:$0xff]
        %v341 = vld [vmem:[%s207 + $0x278] sm:$0xff]
        %v342 = vld [vmem:[%s207 + $0x280] sm:$0xff]
        %v343 = vld [vmem:[%s207 + $0x288] sm:$0xff]
        %v344 = vld [vmem:[%s207 + $0x290] sm:$0xff]
        %v345 = vld [vmem:[%s207 + $0x298] sm:$0xff]
        %v346 = vld [vmem:[%s207 + $0x2a0] sm:$0xff]
        %v347 = vld [vmem:[%s207 + $0x2a8] sm:$0xff]
        %v348 = vld [vmem:[%s207 + $0x2b0] sm:$0xff]
        %v349 = vld [vmem:[%s207 + $0x2b8] sm:$0xff]
        %v350 = vld [vmem:[%s207 + $0x2c0] sm:$0xff]
        %v351 = vld [vmem:[%s207 + $0x2c8] sm:$0xff]
        %v352 = vld [vmem:[%s207 + $0x2d0] sm:$0xff]
        %v353 = vld [vmem:[%s207 + $0x2d8] sm:$0xff]
        %v354 = vld [vmem:[%s207 + $0x2e0] sm:$0xff]
        %v355 = vld [vmem:[%s207 + $0x2e8] sm:$0xff]
        %v356 = vld [vmem:[%s207 + $0x2f0] sm:$0xff]
        %v357 = vld [vmem:[%s207 + $0x2f8] sm:$0xff]
        %v360 = vunpack.c.l.b16 %v260
        %v361 = vunpack.c.h.b16 %v260
        %v362 = vunpack.c.l.b16 %v261
        %v363 = vunpack.c.h.b16 %v261
        %v364 = vpack.c.b16 %v362, %v360
        %v365 = vpack.c.b16 %v363, %v361
        %v464 = vunpack.c.l.b16 %v262
        %v465 = vunpack.c.h.b16 %v262
        %v466 = vunpack.c.l.b16 %v263
        %v467 = vunpack.c.h.b16 %v263
        %v468 = vunpack.c.l.b16 %v264
        %v469 = vunpack.c.h.b16 %v264
        %v470 = vunpack.c.l.b16 %v265
        %v471 = vunpack.c.h.b16 %v265
        %v472 = vunpack.c.l.b16 %v266
        %v473 = vunpack.c.h.b16 %v266
        %v474 = vunpack.c.l.b16 %v267
        %v475 = vunpack.c.h.b16 %v267
        %v476 = vunpack.c.l.b16 %v268
        %v477 = vunpack.c.h.b16 %v268
        %v478 = vunpack.c.l.b16 %v269
        %v479 = vunpack.c.h.b16 %v269
        %v480 = vunpack.c.l.b16 %v270
        %v481 = vunpack.c.h.b16 %v270
        %v482 = vunpack.c.l.b16 %v271
        %v483 = vunpack.c.h.b16 %v271
        %v484 = vunpack.c.l.b16 %v272
        %v485 = vunpack.c.h.b16 %v272
        %v486 = vunpack.c.l.b16 %v273
        %v487 = vunpack.c.h.b16 %v273
        %v488 = vunpack.c.l.b16 %v274
        %v489 = vunpack.c.h.b16 %v274
        %v490 = vunpack.c.l.b16 %v275
        %v491 = vunpack.c.h.b16 %v275
        %v492 = vunpack.c.l.b16 %v276
        %v493 = vunpack.c.h.b16 %v276
        %v494 = vunpack.c.l.b16 %v277
        %v495 = vunpack.c.h.b16 %v277
        %v496 = vunpack.c.l.b16 %v278
        %v497 = vunpack.c.h.b16 %v278
        %v498 = vunpack.c.l.b16 %v279
        %v499 = vunpack.c.h.b16 %v279
        %v500 = vunpack.c.l.b16 %v280
        %v501 = vunpack.c.h.b16 %v280
        %v502 = vunpack.c.l.b16 %v281
        %v503 = vunpack.c.h.b16 %v281
        %v504 = vunpack.c.l.b16 %v282
        %v505 = vunpack.c.h.b16 %v282
        %v506 = vunpack.c.l.b16 %v283
        %v507 = vunpack.c.h.b16 %v283
        %v508 = vunpack.c.l.b16 %v284
        %v509 = vunpack.c.h.b16 %v284
        %v510 = vunpack.c.l.b16 %v285
        %v511 = vunpack.c.h.b16 %v285
        %v512 = vunpack.c.l.b16 %v286
        %v513 = vunpack.c.h.b16 %v286
        %v514 = vunpack.c.l.b16 %v287
        %v515 = vunpack.c.h.b16 %v287
        %v516 = vunpack.c.l.b16 %v288
        %v517 = vunpack.c.h.b16 %v288
        %v518 = vunpack.c.l.b16 %v289
        %v519 = vunpack.c.h.b16 %v289
        %v520 = vunpack.c.l.b16 %v290
        %v521 = vunpack.c.h.b16 %v290
        %v522 = vunpack.c.l.b16 %v291
        %v523 = vunpack.c.h.b16 %v291
        %v524 = vunpack.c.l.b16 %v292
        %v525 = vunpack.c.h.b16 %v292
        %v526 = vunpack.c.l.b16 %v293
        %v527 = vunpack.c.h.b16 %v293
        %v528 = vunpack.c.l.b16 %v294
        %v529 = vunpack.c.h.b16 %v294
        %v530 = vunpack.c.l.b16 %v295
        %v531 = vunpack.c.h.b16 %v295
        %v532 = vunpack.c.l.b16 %v296
        %v533 = vunpack.c.h.b16 %v296
        %v534 = vunpack.c.l.b16 %v297
        %v535 = vunpack.c.h.b16 %v297
        %v536 = vunpack.c.l.b16 %v298
        %v537 = vunpack.c.h.b16 %v298
        %v538 = vunpack.c.l.b16 %v299
        %v539 = vunpack.c.h.b16 %v299
        %v540 = vunpack.c.l.b16 %v300
        %v541 = vunpack.c.h.b16 %v300
        %v542 = vunpack.c.l.b16 %v301
        %v543 = vunpack.c.h.b16 %v301
        %v544 = vunpack.c.l.b16 %v302
        %v545 = vunpack.c.h.b16 %v302
        %v546 = vunpack.c.l.b16 %v303
        %v547 = vunpack.c.h.b16 %v303
        %v548 = vunpack.c.l.b16 %v304
        %v549 = vunpack.c.h.b16 %v304
        %v550 = vunpack.c.l.b16 %v305
        %v551 = vunpack.c.h.b16 %v305
        %v552 = vunpack.c.l.b16 %v306
        %v553 = vunpack.c.h.b16 %v306
        %v554 = vunpack.c.l.b16 %v307
        %v555 = vunpack.c.h.b16 %v307
        %v556 = vunpack.c.l.b16 %v308
        %v557 = vunpack.c.h.b16 %v308
        %v558 = vunpack.c.l.b16 %v309
        %v559 = vunpack.c.h.b16 %v309
        %v560 = vunpack.c.l.b16 %v310
        %v561 = vunpack.c.h.b16 %v310
        %v562 = vunpack.c.l.b16 %v311
        %v563 = vunpack.c.h.b16 %v311
        %v564 = vunpack.c.l.b16 %v312
        %v565 = vunpack.c.h.b16 %v312
        %v566 = vunpack.c.l.b16 %v313
        %v567 = vunpack.c.h.b16 %v313
        %v568 = vunpack.c.l.b16 %v314
        %v569 = vunpack.c.h.b16 %v314
        %v570 = vunpack.c.l.b16 %v315
        %v571 = vunpack.c.h.b16 %v315
        %v572 = vunpack.c.l.b16 %v316
        %v573 = vunpack.c.h.b16 %v316
        %v574 = vunpack.c.l.b16 %v317
        %v575 = vunpack.c.h.b16 %v317
        %v576 = vunpack.c.l.b16 %v318
        %v577 = vunpack.c.h.b16 %v318
        %v578 = vunpack.c.l.b16 %v319
        %v579 = vunpack.c.h.b16 %v319
        %v580 = vunpack.c.l.b16 %v320
        %v581 = vunpack.c.h.b16 %v320
        %v582 = vunpack.c.l.b16 %v321
        %v583 = vunpack.c.h.b16 %v321
        %v584 = vunpack.c.l.b16 %v322
        %v585 = vunpack.c.h.b16 %v322
        %v586 = vunpack.c.l.b16 %v323
        %v587 = vunpack.c.h.b16 %v323
        %v588 = vunpack.c.l.b16 %v324
        %v589 = vunpack.c.h.b16 %v324
        %v590 = vunpack.c.l.b16 %v325
        %v591 = vunpack.c.h.b16 %v325
        %v592 = vunpack.c.l.b16 %v326
        %v593 = vunpack.c.h.b16 %v326
        %v594 = vunpack.c.l.b16 %v327
        %v595 = vunpack.c.h.b16 %v327
        %v596 = vunpack.c.l.b16 %v328
        %v597 = vunpack.c.h.b16 %v328
        %v598 = vunpack.c.l.b16 %v329
        %v599 = vunpack.c.h.b16 %v329
        %v600 = vunpack.c.l.b16 %v330
        %v601 = vunpack.c.h.b16 %v330
        %v602 = vunpack.c.l.b16 %v331
        %v603 = vunpack.c.h.b16 %v331
        %v604 = vunpack.c.l.b16 %v332
        %v605 = vunpack.c.h.b16 %v332
        %v606 = vunpack.c.l.b16 %v333
        %v607 = vunpack.c.h.b16 %v333
        %v608 = vunpack.c.l.b16 %v334
        %v609 = vunpack.c.h.b16 %v334
        %v610 = vunpack.c.l.b16 %v335
        %v611 = vunpack.c.h.b16 %v335
        %v612 = vunpack.c.l.b16 %v336
        %v613 = vunpack.c.h.b16 %v336
        %v614 = vunpack.c.l.b16 %v337
        %v615 = vunpack.c.h.b16 %v337
        %v616 = vunpack.c.l.b16 %v338
        %v617 = vunpack.c.h.b16 %v338
        %v618 = vunpack.c.l.b16 %v339
        %v619 = vunpack.c.h.b16 %v339
        %v620 = vunpack.c.l.b16 %v340
        %v621 = vunpack.c.h.b16 %v340
        %v622 = vunpack.c.l.b16 %v341
        %v623 = vunpack.c.h.b16 %v341
        %v624 = vunpack.c.l.b16 %v342
        %v625 = vunpack.c.h.b16 %v342
        %v626 = vunpack.c.l.b16 %v343
        %v627 = vunpack.c.h.b16 %v343
        %v628 = vunpack.c.l.b16 %v344
        %v629 = vunpack.c.h.b16 %v344
        %v630 = vunpack.c.l.b16 %v345
        %v631 = vunpack.c.h.b16 %v345
        %v632 = vunpack.c.l.b16 %v346
        %v633 = vunpack.c.h.b16 %v346
        %v634 = vunpack.c.l.b16 %v347
        %v635 = vunpack.c.h.b16 %v347
        %v636 = vunpack.c.l.b16 %v348
        %v637 = vunpack.c.h.b16 %v348
        %v638 = vunpack.c.l.b16 %v349
        %v639 = vunpack.c.h.b16 %v349
        %v640 = vunpack.c.l.b16 %v350
        %v641 = vunpack.c.h.b16 %v350
        %v642 = vunpack.c.l.b16 %v351
        %v643 = vunpack.c.h.b16 %v351
        %v644 = vunpack.c.l.b16 %v352
        %v645 = vunpack.c.h.b16 %v352
        %v646 = vunpack.c.l.b16 %v353
        %v647 = vunpack.c.h.b16 %v353
        %v648 = vunpack.c.l.b16 %v354
        %v649 = vunpack.c.h.b16 %v354
        %v650 = vunpack.c.l.b16 %v355
        %v651 = vunpack.c.h.b16 %v355
        %v652 = vunpack.c.l.b16 %v356
        %v653 = vunpack.c.h.b16 %v356
        %v654 = vunpack.c.l.b16 %v357
        %v655 = vunpack.c.h.b16 %v357
        %v656 = vpack.c.b16 %v470, %v464
        %v657 = vpack.c.b16 %v471, %v465
        %v658 = vpack.c.b16 %v472, %v466
        %v659 = vpack.c.b16 %v473, %v467
        %v660 = vpack.c.b16 %v474, %v468
        %v661 = vpack.c.b16 %v475, %v469
        %v662 = vpack.c.b16 %v482, %v476
        %v663 = vpack.c.b16 %v483, %v477
        %v664 = vpack.c.b16 %v484, %v478
        %v665 = vpack.c.b16 %v485, %v479
        %v666 = vpack.c.b16 %v486, %v480
        %v667 = vpack.c.b16 %v487, %v481
        %v668 = vpack.c.b16 %v494, %v488
        %v669 = vpack.c.b16 %v495, %v489
        %v670 = vpack.c.b16 %v496, %v490
        %v671 = vpack.c.b16 %v497, %v491
        %v672 = vpack.c.b16 %v498, %v492
        %v673 = vpack.c.b16 %v499, %v493
        %v674 = vpack.c.b16 %v506, %v500
        %v675 = vpack.c.b16 %v507, %v501
        %v676 = vpack.c.b16 %v508, %v502
        %v677 = vpack.c.b16 %v509, %v503
        %v678 = vpack.c.b16 %v510, %v504
        %v679 = vpack.c.b16 %v511, %v505
        %v680 = vpack.c.b16 %v518, %v512
        %v681 = vpack.c.b16 %v519, %v513
        %v682 = vpack.c.b16 %v520, %v514
        %v683 = vpack.c.b16 %v521, %v515
        %v684 = vpack.c.b16 %v522, %v516
        %v685 = vpack.c.b16 %v523, %v517
        %v686 = vpack.c.b16 %v530, %v524
        %v687 = vpack.c.b16 %v531, %v525
        %v688 = vpack.c.b16 %v532, %v526
        %v689 = vpack.c.b16 %v533, %v527
        %v690 = vpack.c.b16 %v534, %v528
        %v691 = vpack.c.b16 %v535, %v529
        %v692 = vpack.c.b16 %v542, %v536
        %v693 = vpack.c.b16 %v543, %v537
        %v694 = vpack.c.b16 %v544, %v538
        %v695 = vpack.c.b16 %v545, %v539
        %v696 = vpack.c.b16 %v546, %v540
        %v697 = vpack.c.b16 %v547, %v541
        %v698 = vpack.c.b16 %v554, %v548
        %v699 = vpack.c.b16 %v555, %v549
        %v700 = vpack.c.b16 %v556, %v550
        %v701 = vpack.c.b16 %v557, %v551
        %v702 = vpack.c.b16 %v558, %v552
        %v703 = vpack.c.b16 %v559, %v553
        %v704 = vpack.c.b16 %v566, %v560
        %v705 = vpack.c.b16 %v567, %v561
        %v706 = vpack.c.b16 %v568, %v562
        %v707 = vpack.c.b16 %v569, %v563
        %v708 = vpack.c.b16 %v570, %v564
        %v709 = vpack.c.b16 %v571, %v565
        %v710 = vpack.c.b16 %v578, %v572
        %v711 = vpack.c.b16 %v579, %v573
        %v712 = vpack.c.b16 %v580, %v574
        %v713 = vpack.c.b16 %v581, %v575
        %v714 = vpack.c.b16 %v582, %v576
        %v715 = vpack.c.b16 %v583, %v577
        %v716 = vpack.c.b16 %v590, %v584
        %v717 = vpack.c.b16 %v591, %v585
        %v718 = vpack.c.b16 %v592, %v586
        %v719 = vpack.c.b16 %v593, %v587
        %v720 = vpack.c.b16 %v594, %v588
        %v721 = vpack.c.b16 %v595, %v589
        %v722 = vpack.c.b16 %v602, %v596
        %v723 = vpack.c.b16 %v603, %v597
        %v724 = vpack.c.b16 %v604, %v598
        %v725 = vpack.c.b16 %v605, %v599
        %v726 = vpack.c.b16 %v606, %v600
        %v727 = vpack.c.b16 %v607, %v601
        %v728 = vpack.c.b16 %v614, %v608
        %v729 = vpack.c.b16 %v615, %v609
        %v730 = vpack.c.b16 %v616, %v610
        %v731 = vpack.c.b16 %v617, %v611
        %v732 = vpack.c.b16 %v618, %v612
        %v733 = vpack.c.b16 %v619, %v613
        %v734 = vpack.c.b16 %v626, %v620
        %v735 = vpack.c.b16 %v627, %v621
        %v736 = vpack.c.b16 %v628, %v622
        %v737 = vpack.c.b16 %v629, %v623
        %v738 = vpack.c.b16 %v630, %v624
        %v739 = vpack.c.b16 %v631, %v625
        %v740 = vpack.c.b16 %v638, %v632
        %v741 = vpack.c.b16 %v639, %v633
        %v742 = vpack.c.b16 %v640, %v634
        %v743 = vpack.c.b16 %v641, %v635
        %v744 = vpack.c.b16 %v642, %v636
        %v745 = vpack.c.b16 %v643, %v637
        %v746 = vpack.c.b16 %v650, %v644
        %v747 = vpack.c.b16 %v651, %v645
        %v748 = vpack.c.b16 %v652, %v646
        %v749 = vpack.c.b16 %v653, %v647
        %v750 = vpack.c.b16 %v654, %v648
        %v751 = vpack.c.b16 %v655, %v649
        %848 = vmatprep.subr.bf16.mxu0 %v699
        %849 = vmatpush1.bf16.msra.mxu0 %v698
        %850 = vmatprep.subr.bf16.mxu0 %v693
        %851 = vmatpush1.bf16.msra.mxu0 %v692
        %852 = vmatprep.subr.bf16.mxu0 %v687
        %853 = vmatpush1.bf16.msra.mxu0 %v686
        %854 = vmatprep.subr.bf16.mxu0 %v681
        %855 = vmatpush1.bf16.msra.mxu0 %v680
        %856 = vmatprep.subr.bf16.mxu0 %v675
        %857 = vmatpush1.bf16.msra.mxu0 %v674
        %858 = vmatprep.subr.bf16.mxu0 %v669
        %859 = vmatpush1.bf16.msra.mxu0 %v668
        %860 = vmatprep.subr.bf16.mxu0 %v663
        %861 = vmatpush1.bf16.msra.mxu0 %v662
        %862 = vmatprep.subr.bf16.mxu0 %v657
        %863 = vmatpush1.bf16.msra.mxu0 %v656
        %864 = vmatprep.subr.bf16.mxu0 %v747
        %865 = vmatpush2.bf16.msra.mxu0 %v746
        %866 = vmatprep.subr.bf16.mxu0 %v741
        %867 = vmatpush2.bf16.msra.mxu0 %v740
        %868 = vmatprep.subr.bf16.mxu0 %v735
        %869 = vmatpush2.bf16.msra.mxu0 %v734
        %870 = vmatprep.subr.bf16.mxu0 %v729
        %871 = vmatpush2.bf16.msra.mxu0 %v728
        %872 = vmatprep.subr.bf16.mxu0 %v723
        %873 = vmatpush2.bf16.msra.mxu0 %v722
        %874 = vmatprep.subr.bf16.mxu0 %v717
        %875 = vmatpush2.bf16.msra.mxu0 %v716
        %876 = vmatprep.subr.bf16.mxu0 %v711
        %877 = vmatpush2.bf16.msra.mxu0 %v710
        %878 = vmatprep.subr.bf16.mxu0 %v705
        %879 = vmatpush2.bf16.msra.mxu0 %v704
        %880 = vmatprep.mubr.bf16.mxu0 %v365
        %881 = vmatmul.mubr.bf16.gmra.mxu0 %v364
        %v882 = vpop.f32.mrf.mxu0
        %v883 = vadd.f32 0.0, %v882
        %v884 = vpop.f32.mrf.mxu0
        %v885 = vadd.f32 0.0, %v884
        %v886 = vpop.f32.mrf.mxu0
        %v887 = vadd.f32 0.0, %v886
        %v888 = vpop.f32.mrf.mxu0
        %v889 = vadd.f32 0.0, %v888
        %890 = vdwg.mxu0
        %891 = vmatprep.subr.bf16.mxu0 %v701
        %892 = vmatpush1.bf16.msra.mxu0 %v700
        %893 = vmatprep.subr.bf16.mxu0 %v695
        %894 = vmatpush1.bf16.msra.mxu0 %v694
        %895 = vmatprep.subr.bf16.mxu0 %v689
        %896 = vmatpush1.bf16.msra.mxu0 %v688
        %897 = vmatprep.subr.bf16.mxu0 %v683
        %898 = vmatpush1.bf16.msra.mxu0 %v682
        %899 = vmatprep.subr.bf16.mxu0 %v677
        %900 = vmatpush1.bf16.msra.mxu0 %v676
        %901 = vmatprep.subr.bf16.mxu0 %v671
        %902 = vmatpush1.bf16.msra.mxu0 %v670
        %903 = vmatprep.subr.bf16.mxu0 %v665
        %904 = vmatpush1.bf16.msra.mxu0 %v664
        %905 = vmatprep.subr.bf16.mxu0 %v659
        %906 = vmatpush1.bf16.msra.mxu0 %v658
        %907 = vmatprep.subr.bf16.mxu0 %v749
        %908 = vmatpush2.bf16.msra.mxu0 %v748
        %909 = vmatprep.subr.bf16.mxu0 %v743
        %910 = vmatpush2.bf16.msra.mxu0 %v742
        %911 = vmatprep.subr.bf16.mxu0 %v737
        %912 = vmatpush2.bf16.msra.mxu0 %v736
        %913 = vmatprep.subr.bf16.mxu0 %v731
        %914 = vmatpush2.bf16.msra.mxu0 %v730
        %915 = vmatprep.subr.bf16.mxu0 %v725
        %916 = vmatpush2.bf16.msra.mxu0 %v724
        %917 = vmatprep.subr.bf16.mxu0 %v719
        %918 = vmatpush2.bf16.msra.mxu0 %v718
        %919 = vmatprep.subr.bf16.mxu0 %v713
        %920 = vmatpush2.bf16.msra.mxu0 %v712
        %921 = vmatprep.subr.bf16.mxu0 %v707
        %922 = vmatpush2.bf16.msra.mxu0 %v706
        %923 = vmatprep.mubr.bf16.mxu0 %v365
        %924 = vmatmul.mubr.bf16.gmra.mxu0 %v364
        %v925 = vpop.f32.mrf.mxu0
        %v926 = vadd.f32 0.0, %v925
        %v927 = vpop.f32.mrf.mxu0
        %v928 = vadd.f32 0.0, %v927
        %v929 = vpop.f32.mrf.mxu0
        %v930 = vadd.f32 0.0, %v929
        %v931 = vpop.f32.mrf.mxu0
        %v932 = vadd.f32 0.0, %v931
        %933 = vdwg.mxu0
        %934 = vmatprep.subr.bf16.mxu0 %v703
        %935 = vmatpush1.bf16.msra.mxu0 %v702
        %936 = vmatprep.subr.bf16.mxu0 %v697
        %937 = vmatpush1.bf16.msra.mxu0 %v696
        %938 = vmatprep.subr.bf16.mxu0 %v691
        %939 = vmatpush1.bf16.msra.mxu0 %v690
        %940 = vmatprep.subr.bf16.mxu0 %v685
        %941 = vmatpush1.bf16.msra.mxu0 %v684
        %942 = vmatprep.subr.bf16.mxu0 %v679
        %943 = vmatpush1.bf16.msra.mxu0 %v678
        %944 = vmatprep.subr.bf16.mxu0 %v673
        %945 = vmatpush1.bf16.msra.mxu0 %v672
        %946 = vmatprep.subr.bf16.mxu0 %v667
        %947 = vmatpush1.bf16.msra.mxu0 %v666
        %948 = vmatprep.subr.bf16.mxu0 %v661
        %949 = vmatpush1.bf16.msra.mxu0 %v660
        %950 = vmatprep.subr.bf16.mxu0 %v751
        %951 = vmatpush2.bf16.msra.mxu0 %v750
        %952 = vmatprep.subr.bf16.mxu0 %v745
        %953 = vmatpush2.bf16.msra.mxu0 %v744
        %954 = vmatprep.subr.bf16.mxu0 %v739
        %955 = vmatpush2.bf16.msra.mxu0 %v738
        %956 = vmatprep.subr.bf16.mxu0 %v733
        %957 = vmatpush2.bf16.msra.mxu0 %v732
        %958 = vmatprep.subr.bf16.mxu0 %v727
        %959 = vmatpush2.bf16.msra.mxu0 %v726
        %960 = vmatprep.subr.bf16.mxu0 %v721
        %961 = vmatpush2.bf16.msra.mxu0 %v720
        %962 = vmatprep.subr.bf16.mxu0 %v715
        %963 = vmatpush2.bf16.msra.mxu0 %v714
        %964 = vmatprep.subr.bf16.mxu0 %v709
        %965 = vmatpush2.bf16.msra.mxu0 %v708
        %966 = vmatprep.mubr.bf16.mxu0 %v365
        %967 = vmatmul.mubr.bf16.gmra.mxu0 %v364
        %v968 = vpop.f32.mrf.mxu0
        %v969 = vadd.f32 0.0, %v968
        %v970 = vpop.f32.mrf.mxu0
        %v971 = vadd.f32 0.0, %v970
        %v972 = vpop.f32.mrf.mxu0
        %v973 = vadd.f32 0.0, %v972
        %v974 = vpop.f32.mrf.mxu0
        %v975 = vadd.f32 0.0, %v974
        %976 = vdwg.mxu0
        %v977 = vxor.u32 %v883, 2147483648
        %v978 = vxor.u32 %v885, 2147483648
        %v979 = vxor.u32 %v926, 2147483648
        %v980 = vxor.u32 %v887, 2147483648
        %v981 = vxor.u32 %v889, 2147483648
        %v982 = vxor.u32 %v930, 2147483648
        %v983 = vmul.f32 %v977, 1.442695
        %v984 = vpow.pop %v983
        %v985 = vmul.f32 %v978, 1.442695
        %v986 = vpow.pop %v985
        %v987 = vmul.f32 %v979, 1.442695
        %v988 = vpow.pop %v987
        %v989 = vmul.f32 %v980, 1.442695
        %v990 = vpow.pop %v989
        %v991 = vmul.f32 %v981, 1.442695
        %v992 = vpow.pop %v991
        %v993 = vmul.f32 %v982, 1.442695
        %v994 = vpow.pop %v993
        %v995 = vadd.f32 %v984, 1.0
        %v996 = vadd.f32 %v986, 1.0
        %v997 = vadd.f32 %v988, 1.0
        %v998 = vadd.f32 %v990, 1.0
        %v999 = vadd.f32 %v992, 1.0
        %v1000 = vadd.f32 %v994, 1.0
        %v1001 = vrcp.pop %v995
        %v1002 = vmul.f32 1.0, %v1001
        %v1003 = vrcp.pop %v996
        %v1004 = vmul.f32 1.0, %v1003
        %v1005 = vrcp.pop %v997
        %v1006 = vmul.f32 1.0, %v1005
        %v1007 = vrcp.pop %v998
        %v1008 = vmul.f32 1.0, %v1007
        %v1009 = vrcp.pop %v999
        %v1010 = vmul.f32 1.0, %v1009
        %v1011 = vrcp.pop %v1000
        %v1012 = vmul.f32 1.0, %v1011
        %v1013 = vmul.f32 %v883, %v1002
        %v1014 = vmul.f32 %v885, %v1004
        %v1015 = vmul.f32 %v926, %v1006
        %v1016 = vmul.f32 %v887, %v1008
        %v1017 = vmul.f32 %v889, %v1010
        %v1018 = vmul.f32 %v930, %v1012
        %v1019 = vmul.f32 %v1013, %v928
        %v1020 = vmul.f32 %v1014, %v969
        %v1021 = vmul.f32 %v1015, %v971
        %v1022 = vmul.f32 %v1016, %v932
        %v1023 = vmul.f32 %v1017, %v973
        %v1024 = vmul.f32 %v1018, %v975
        %v1025 = vld [vmem:[#allocation2] sm:$0xff]
        %v1026 = vld [vmem:[#allocation2 + $0x8] sm:$0xff]
        %v1027 = vld [vmem:[#allocation2 + $0x10] sm:$0xff]
        %v1028 = vld [vmem:[#allocation2 + $0x18] sm:$0xff]
        %v1029 = vpack.c.bf16 %v1022, %v1019
        %v1030 = vpack.c.bf16 %v1023, %v1020
        %v1031 = vpack.c.bf16 %v1024, %v1021
        %v1032 = vld [vmem:[%s216] sm:$0xff]
        %v1033 = vld [vmem:[%s216 + $0x8] sm:$0xff]
        %v1034 = vld [vmem:[%s216 + $0x10] sm:$0xff]
        %v1035 = vld [vmem:[%s216 + $0x18] sm:$0xff]
        %v1036 = vld [vmem:[%s216 + $0x20] sm:$0xff]
        %v1037 = vld [vmem:[%s216 + $0x28] sm:$0xff]
        %v1038 = vld [vmem:[%s216 + $0x30] sm:$0xff]
        %v1039 = vld [vmem:[%s216 + $0x38] sm:$0xff]
        %v1040 = vld [vmem:[%s216 + $0x40] sm:$0xff]
        %v1041 = vld [vmem:[%s216 + $0x48] sm:$0xff]
        %v1042 = vld [vmem:[%s216 + $0x50] sm:$0xff]
        %v1043 = vld [vmem:[%s216 + $0x58] sm:$0xff]
        %v1044 = vld [vmem:[%s216 + $0x60] sm:$0xff]
        %v1045 = vld [vmem:[%s216 + $0x68] sm:$0xff]
        %v1046 = vld [vmem:[%s216 + $0x70] sm:$0xff]
        %v1047 = vld [vmem:[%s216 + $0x78] sm:$0xff]
        %v1048 = vld [vmem:[%s216 + $0x80] sm:$0xff]
        %v1049 = vld [vmem:[%s216 + $0x88] sm:$0xff]
        %v1050 = vld [vmem:[%s216 + $0x90] sm:$0xff]
        %v1051 = vld [vmem:[%s216 + $0x98] sm:$0xff]
        %v1052 = vld [vmem:[%s216 + $0xa0] sm:$0xff]
        %v1053 = vld [vmem:[%s216 + $0xa8] sm:$0xff]
        %v1054 = vld [vmem:[%s216 + $0xb0] sm:$0xff]
        %v1055 = vld [vmem:[%s216 + $0xb8] sm:$0xff]
        %v1056 = vld [vmem:[%s216 + $0xc0] sm:$0xff]
        %v1057 = vld [vmem:[%s216 + $0xc8] sm:$0xff]
        %v1058 = vld [vmem:[%s216 + $0xd0] sm:$0xff]
        %v1059 = vld [vmem:[%s216 + $0xd8] sm:$0xff]
        %v1060 = vld [vmem:[%s216 + $0xe0] sm:$0xff]
        %v1061 = vld [vmem:[%s216 + $0xe8] sm:$0xff]
        %v1062 = vld [vmem:[%s216 + $0xf0] sm:$0xff]
        %v1063 = vld [vmem:[%s216 + $0xf8] sm:$0xff]
        %v1064 = vld [vmem:[%s216 + $0x100] sm:$0xff]
        %v1065 = vld [vmem:[%s216 + $0x108] sm:$0xff]
        %v1066 = vld [vmem:[%s216 + $0x110] sm:$0xff]
        %v1067 = vld [vmem:[%s216 + $0x118] sm:$0xff]
        %v1068 = vld [vmem:[%s216 + $0x120] sm:$0xff]
        %v1069 = vld [vmem:[%s216 + $0x128] sm:$0xff]
        %v1070 = vld [vmem:[%s216 + $0x130] sm:$0xff]
        %v1071 = vld [vmem:[%s216 + $0x138] sm:$0xff]
        %v1072 = vld [vmem:[%s216 + $0x140] sm:$0xff]
        %v1073 = vld [vmem:[%s216 + $0x148] sm:$0xff]
        %v1074 = vld [vmem:[%s216 + $0x150] sm:$0xff]
        %v1075 = vld [vmem:[%s216 + $0x158] sm:$0xff]
        %v1076 = vld [vmem:[%s216 + $0x160] sm:$0xff]
        %v1077 = vld [vmem:[%s216 + $0x168] sm:$0xff]
        %v1078 = vld [vmem:[%s216 + $0x170] sm:$0xff]
        %v1079 = vld [vmem:[%s216 + $0x178] sm:$0xff]
        %v1128 = vunpack.c.l.b16 %v1032
        %v1129 = vunpack.c.h.b16 %v1032
        %v1130 = vunpack.c.l.b16 %v1033
        %v1131 = vunpack.c.h.b16 %v1033
        %v1132 = vunpack.c.l.b16 %v1034
        %v1133 = vunpack.c.h.b16 %v1034
        %v1134 = vunpack.c.l.b16 %v1035
        %v1135 = vunpack.c.h.b16 %v1035
        %v1136 = vunpack.c.l.b16 %v1036
        %v1137 = vunpack.c.h.b16 %v1036
        %v1138 = vunpack.c.l.b16 %v1037
        %v1139 = vunpack.c.h.b16 %v1037
        %v1140 = vunpack.c.l.b16 %v1038
        %v1141 = vunpack.c.h.b16 %v1038
        %v1142 = vunpack.c.l.b16 %v1039
        %v1143 = vunpack.c.h.b16 %v1039
        %v1144 = vunpack.c.l.b16 %v1040
        %v1145 = vunpack.c.h.b16 %v1040
        %v1146 = vunpack.c.l.b16 %v1041
        %v1147 = vunpack.c.h.b16 %v1041
        %v1148 = vunpack.c.l.b16 %v1042
        %v1149 = vunpack.c.h.b16 %v1042
        %v1150 = vunpack.c.l.b16 %v1043
        %v1151 = vunpack.c.h.b16 %v1043
        %v1152 = vunpack.c.l.b16 %v1044
        %v1153 = vunpack.c.h.b16 %v1044
        %v1154 = vunpack.c.l.b16 %v1045
        %v1155 = vunpack.c.h.b16 %v1045
        %v1156 = vunpack.c.l.b16 %v1046
        %v1157 = vunpack.c.h.b16 %v1046
        %v1158 = vunpack.c.l.b16 %v1047
        %v1159 = vunpack.c.h.b16 %v1047
        %v1160 = vunpack.c.l.b16 %v1048
        %v1161 = vunpack.c.h.b16 %v1048
        %v1162 = vunpack.c.l.b16 %v1049
        %v1163 = vunpack.c.h.b16 %v1049
        %v1164 = vunpack.c.l.b16 %v1050
        %v1165 = vunpack.c.h.b16 %v1050
        %v1166 = vunpack.c.l.b16 %v1051
        %v1167 = vunpack.c.h.b16 %v1051
        %v1168 = vunpack.c.l.b16 %v1052
        %v1169 = vunpack.c.h.b16 %v1052
        %v1170 = vunpack.c.l.b16 %v1053
        %v1171 = vunpack.c.h.b16 %v1053
        %v1172 = vunpack.c.l.b16 %v1054
        %v1173 = vunpack.c.h.b16 %v1054
        %v1174 = vunpack.c.l.b16 %v1055
        %v1175 = vunpack.c.h.b16 %v1055
        %v1176 = vunpack.c.l.b16 %v1056
        %v1177 = vunpack.c.h.b16 %v1056
        %v1178 = vunpack.c.l.b16 %v1057
        %v1179 = vunpack.c.h.b16 %v1057
        %v1180 = vunpack.c.l.b16 %v1058
        %v1181 = vunpack.c.h.b16 %v1058
        %v1182 = vunpack.c.l.b16 %v1059
        %v1183 = vunpack.c.h.b16 %v1059
        %v1184 = vunpack.c.l.b16 %v1060
        %v1185 = vunpack.c.h.b16 %v1060
        %v1186 = vunpack.c.l.b16 %v1061
        %v1187 = vunpack.c.h.b16 %v1061
        %v1188 = vunpack.c.l.b16 %v1062
        %v1189 = vunpack.c.h.b16 %v1062
        %v1190 = vunpack.c.l.b16 %v1063
        %v1191 = vunpack.c.h.b16 %v1063
        %v1192 = vunpack.c.l.b16 %v1064
        %v1193 = vunpack.c.h.b16 %v1064
        %v1194 = vunpack.c.l.b16 %v1065
        %v1195 = vunpack.c.h.b16 %v1065
        %v1196 = vunpack.c.l.b16 %v1066
        %v1197 = vunpack.c.h.b16 %v1066
        %v1198 = vunpack.c.l.b16 %v1067
        %v1199 = vunpack.c.h.b16 %v1067
        %v1200 = vunpack.c.l.b16 %v1068
        %v1201 = vunpack.c.h.b16 %v1068
        %v1202 = vunpack.c.l.b16 %v1069
        %v1203 = vunpack.c.h.b16 %v1069
        %v1204 = vunpack.c.l.b16 %v1070
        %v1205 = vunpack.c.h.b16 %v1070
        %v1206 = vunpack.c.l.b16 %v1071
        %v1207 = vunpack.c.h.b16 %v1071
        %v1208 = vunpack.c.l.b16 %v1072
        %v1209 = vunpack.c.h.b16 %v1072
        %v1210 = vunpack.c.l.b16 %v1073
        %v1211 = vunpack.c.h.b16 %v1073
        %v1212 = vunpack.c.l.b16 %v1074
        %v1213 = vunpack.c.h.b16 %v1074
        %v1214 = vunpack.c.l.b16 %v1075
        %v1215 = vunpack.c.h.b16 %v1075
        %v1216 = vunpack.c.l.b16 %v1076
        %v1217 = vunpack.c.h.b16 %v1076
        %v1218 = vunpack.c.l.b16 %v1077
        %v1219 = vunpack.c.h.b16 %v1077
        %v1220 = vunpack.c.l.b16 %v1078
        %v1221 = vunpack.c.h.b16 %v1078
        %v1222 = vunpack.c.l.b16 %v1079
        %v1223 = vunpack.c.h.b16 %v1079
        %v1224 = vpack.c.b16 %v1130, %v1128
        %v1225 = vpack.c.b16 %v1131, %v1129
        %v1226 = vpack.c.b16 %v1134, %v1132
        %v1227 = vpack.c.b16 %v1135, %v1133
        %v1228 = vpack.c.b16 %v1138, %v1136
        %v1229 = vpack.c.b16 %v1139, %v1137
        %v1230 = vpack.c.b16 %v1142, %v1140
        %v1231 = vpack.c.b16 %v1143, %v1141
        %v1232 = vpack.c.b16 %v1146, %v1144
        %v1233 = vpack.c.b16 %v1147, %v1145
        %v1234 = vpack.c.b16 %v1150, %v1148
        %v1235 = vpack.c.b16 %v1151, %v1149
        %v1236 = vpack.c.b16 %v1154, %v1152
        %v1237 = vpack.c.b16 %v1155, %v1153
        %v1238 = vpack.c.b16 %v1158, %v1156
        %v1239 = vpack.c.b16 %v1159, %v1157
        %v1240 = vpack.c.b16 %v1162, %v1160
        %v1241 = vpack.c.b16 %v1163, %v1161
        %v1242 = vpack.c.b16 %v1166, %v1164
        %v1243 = vpack.c.b16 %v1167, %v1165
        %v1244 = vpack.c.b16 %v1170, %v1168
        %v1245 = vpack.c.b16 %v1171, %v1169
        %v1246 = vpack.c.b16 %v1174, %v1172
        %v1247 = vpack.c.b16 %v1175, %v1173
        %v1248 = vpack.c.b16 %v1178, %v1176
        %v1249 = vpack.c.b16 %v1179, %v1177
        %v1250 = vpack.c.b16 %v1182, %v1180
        %v1251 = vpack.c.b16 %v1183, %v1181
        %v1252 = vpack.c.b16 %v1186, %v1184
        %v1253 = vpack.c.b16 %v1187, %v1185
        %v1254 = vpack.c.b16 %v1190, %v1188
        %v1255 = vpack.c.b16 %v1191, %v1189
        %v1256 = vpack.c.b16 %v1194, %v1192
        %v1257 = vpack.c.b16 %v1195, %v1193
        %v1258 = vpack.c.b16 %v1198, %v1196
        %v1259 = vpack.c.b16 %v1199, %v1197
        %v1260 = vpack.c.b16 %v1202, %v1200
        %v1261 = vpack.c.b16 %v1203, %v1201
        %v1262 = vpack.c.b16 %v1206, %v1204
        %v1263 = vpack.c.b16 %v1207, %v1205
        %v1264 = vpack.c.b16 %v1210, %v1208
        %v1265 = vpack.c.b16 %v1211, %v1209
        %v1266 = vpack.c.b16 %v1214, %v1212
        %v1267 = vpack.c.b16 %v1215, %v1213
        %v1268 = vpack.c.b16 %v1218, %v1216
        %v1269 = vpack.c.b16 %v1219, %v1217
        %v1270 = vpack.c.b16 %v1222, %v1220
        %v1271 = vpack.c.b16 %v1223, %v1221
        %1320 = vmatprep.subr.bf16.mxu0 %v1239
        %1321 = vmatpush1.bf16.msra.mxu0 %v1238
        %1322 = vmatprep.subr.bf16.mxu0 %v1237
        %1323 = vmatpush1.bf16.msra.mxu0 %v1236
        %1324 = vmatprep.subr.bf16.mxu0 %v1235
        %1325 = vmatpush1.bf16.msra.mxu0 %v1234
        %1326 = vmatprep.subr.bf16.mxu0 %v1233
        %1327 = vmatpush1.bf16.msra.mxu0 %v1232
        %1328 = vmatprep.subr.bf16.mxu0 %v1231
        %1329 = vmatpush1.bf16.msra.mxu0 %v1230
        %1330 = vmatprep.subr.bf16.mxu0 %v1229
        %1331 = vmatpush1.bf16.msra.mxu0 %v1228
        %1332 = vmatprep.subr.bf16.mxu0 %v1227
        %1333 = vmatpush1.bf16.msra.mxu0 %v1226
        %1334 = vmatprep.subr.bf16.mxu0 %v1225
        %1335 = vmatpush1.bf16.msra.mxu0 %v1224
        %1336 = vmatprep.subr.bf16.mxu0 %v1255
        %1337 = vmatpush2.bf16.msra.mxu0 %v1254
        %1338 = vmatprep.subr.bf16.mxu0 %v1253
        %1339 = vmatpush2.bf16.msra.mxu0 %v1252
        %1340 = vmatprep.subr.bf16.mxu0 %v1251
        %1341 = vmatpush2.bf16.msra.mxu0 %v1250
        %1342 = vmatprep.subr.bf16.mxu0 %v1249
        %1343 = vmatpush2.bf16.msra.mxu0 %v1248
        %1344 = vmatprep.subr.bf16.mxu0 %v1247
        %1345 = vmatpush2.bf16.msra.mxu0 %v1246
        %1346 = vmatprep.subr.bf16.mxu0 %v1245
        %1347 = vmatpush2.bf16.msra.mxu0 %v1244
        %1348 = vmatprep.subr.bf16.mxu0 %v1243
        %1349 = vmatpush2.bf16.msra.mxu0 %v1242
        %1350 = vmatprep.subr.bf16.mxu0 %v1241
        %1351 = vmatpush2.bf16.msra.mxu0 %v1240
        %1352 = vmatprep.mubr.bf16.mxu0 %v1030
        %1353 = vmatmul.mubr.bf16.gmra.mxu0 %v1029
        %v1354 = vpop.f32.mrf.mxu0
        %v1355 = vadd.f32 0.0, %v1354
        %v1356 = vpop.f32.mrf.mxu0
        %v1357 = vadd.f32 0.0, %v1356
        %v1358 = vpop.f32.mrf.mxu0
        %v1359 = vadd.f32 0.0, %v1358
        %v1360 = vpop.f32.mrf.mxu0
        %v1361 = vadd.f32 0.0, %v1360
        %1362 = vdwg.mxu0
        %1363 = vmatprep.subr.bf16.mxu0 %v1271
        %1364 = vmatpush1.bf16.msra.mxu0 %v1270
        %1365 = vmatprep.subr.bf16.mxu0 %v1269
        %1366 = vmatpush1.bf16.msra.mxu0 %v1268
        %1367 = vmatprep.subr.bf16.mxu0 %v1267
        %1368 = vmatpush1.bf16.msra.mxu0 %v1266
        %1369 = vmatprep.subr.bf16.mxu0 %v1265
        %1370 = vmatpush1.bf16.msra.mxu0 %v1264
        %1371 = vmatprep.subr.bf16.mxu0 %v1263
        %1372 = vmatpush1.bf16.msra.mxu0 %v1262
        %1373 = vmatprep.subr.bf16.mxu0 %v1261
        %1374 = vmatpush1.bf16.msra.mxu0 %v1260
        %1375 = vmatprep.subr.bf16.mxu0 %v1259
        %1376 = vmatpush1.bf16.msra.mxu0 %v1258
        %1377 = vmatprep.subr.bf16.mxu0 %v1257
        %1378 = vmatpush1.bf16.msra.mxu0 %v1256
        %1379 = vmatprep.subr.bf16.mxu0 0
        %1380 = vmatpush2.bf16.msra.mxu0 0
        %1381 = vmatprep.subr.bf16.mxu0 0
        %1382 = vmatpush2.bf16.msra.mxu0 0
        %1383 = vmatprep.subr.bf16.mxu0 0
        %1384 = vmatpush2.bf16.msra.mxu0 0
        %1385 = vmatprep.subr.bf16.mxu0 0
        %1386 = vmatpush2.bf16.msra.mxu0 0
        %1387 = vmatprep.subr.bf16.mxu0 0
        %1388 = vmatpush2.bf16.msra.mxu0 0
        %1389 = vmatprep.subr.bf16.mxu0 0
        %1390 = vmatpush2.bf16.msra.mxu0 0
        %1391 = vmatprep.subr.bf16.mxu0 0
        %1392 = vmatpush2.bf16.msra.mxu0 0
        %1393 = vmatprep.subr.bf16.mxu0 0
        %1394 = vmatpush2.bf16.msra.mxu0 0
        %1395 = vmatprep.mubr.bf16.mxu0 0
        %1396 = vmatmul.mubr.bf16.gmra.mxu0 %v1031
        %v1397 = vpop.f32.mrf.mxu0
        %v1398 = vadd.f32 %v1355, %v1397
        %v1399 = vpop.f32.mrf.mxu0
        %v1400 = vadd.f32 %v1357, %v1399
        %v1401 = vpop.f32.mrf.mxu0
        %v1402 = vadd.f32 %v1359, %v1401
        %v1403 = vpop.f32.mrf.mxu0
        %v1404 = vadd.f32 %v1361, %v1403
        %1405 = vdwg.mxu0
        %v1406 = vadd.f32 %v1025, %v1398
        %v1407 = vadd.f32 %v1026, %v1400
        %v1408 = vadd.f32 %v1027, %v1402
        %v1409 = vadd.f32 %v1028, %v1404
        %1410 = vst [vmem:[#allocation2] sm:$0xff] %v1406
        %1411 = vst [vmem:[#allocation2 + $0x8] sm:$0xff] %v1407
        %1412 = vst [vmem:[#allocation2 + $0x10] sm:$0xff] %v1408
        %1413 = vst [vmem:[#allocation2 + $0x18] sm:$0xff] %v1409
        // Predicated region
        $region45: #{feed_forward.1} parent=31 // pred_check
          %p1414 = pneg %p252
        $region46: #{feed_forward.1} parent=31 // pred_check_branch
          %1416 = sbr.rel (%p1414) target = $region48
        $region47: #{feed_forward.1} parent=31 // pred_region
          %v1417 = vld [vmem:[#allocation2] sm:$0xff]
          %v1418 = vld [vmem:[#allocation2 + $0x8] sm:$0xff]
          %v1419 = vld [vmem:[#allocation2 + $0x10] sm:$0xff]
          %v1420 = vld [vmem:[#allocation2 + $0x18] sm:$0xff]
          %1421 = vst [vmem:[%s250] sm:$0xff] %v1417
          %1422 = vst [vmem:[%s250 + $0x8] sm:$0xff] %v1418
          %1423 = vst [vmem:[%s250 + $0x10] sm:$0xff] %v1419
          %1424 = vst [vmem:[%s250 + $0x18] sm:$0xff] %v1420
        $region48: #{feed_forward.1} parent=31 // pred_fallthru
          _
        %p1425 = scmp.lt.s32.totalorder %s24, 1
        %s1426 = scalar_select %p1425, %s24, 1
        %s1427 = smul.addr %s1426, 4
        %s1428 = smul.addr %s1427, 8
        %s1429 = scalar_lea.vmem %s3, %s1428
        // Predicated region
        $region49: #{feed_forward.1} parent=31 // pred_check
          %p1430 = pneg %p127
        $region50: #{feed_forward.1} parent=31 // pred_check_branch
          %1432 = sbr.rel (%p1430) target = $region52
        $region51: #{feed_forward.1} parent=31 // pred_region
          _
        $region52: #{feed_forward.1} parent=31 // pred_fallthru
          _
      $region32: #{feed_forward.1} parent=5 // pred_fallthru
        _
      %p1433 = scmp.le.s32.totalorder 2, %s15
      // Predicated region
      $region53: #{feed_forward.1} parent=5 // pred_check
        %p1434 = pneg %p1433
      $region54: #{feed_forward.1} parent=5 // pred_check_branch
        %1436 = sbr.rel (%p1434) target = $region56
      $region55: #{feed_forward.1} parent=5 // pred_region
        %s1437 = ssub.s32 %s15, 2
        // Predicated region
        $region57: #{feed_forward.1} parent=55 // pred_check
          %p1438 = pneg %p133
        $region58: #{feed_forward.1} parent=55 // pred_check_branch
          %1440 = sbr.rel (%p1438) target = $region60
        $region59: #{feed_forward.1} parent=55 // pred_region
          %p1441 = scmp.lt.s32.totalorder %s26, 1
          %s1442 = scalar_select %p1441, %s26, 1
          %s1443 = smul.addr %s1442, 4
          %s1444 = smul.addr %s1443, 8
          %s1445 = scalar_lea.vmem %s3, %s1444
        $region60: #{feed_forward.1} parent=55 // pred_fallthru
          _
      $region56: #{feed_forward.1} parent=5 // pred_fallthru
        _
    $region6: #{feed_forward.1} parent=1 // loop_footer
      %s19 = sadd.s32 1, %s15
    $region7: #{feed_forward.1} parent=1 // loop_footer_branch
      %14 = sbr.rel target = $region3
    $region8: #{feed_forward.1} parent=1 // loop_exit
      _
    %1446 = vsyncpa [#allocation4], 1
    %s1447 = scalar_lea.sflag [#allocation4], 1
    %1448 = vsyncpa %s1447, 1
    %1449 = vsyncpa [#allocation6], 1
    %s1450 = scalar_lea.sflag [#allocation6], 1
    %1451 = vsyncpa %s1450, 1

</llo_original>
